<compile_context>
chip_gen: v5e
topology: v5e:2x2
jax: 0.10.0
libtpu: 0.0.40
codegen_flags: <defaults>
</compile_context>

<pallas_src>
import numpy as np
import jax
import jax.numpy as jnp
from jax.experimental import pallas as pl
from jax.experimental.pallas import tpu as pltpu


def _make_dma_concat_kernel(lengths):
    """Kernel issuing one HBM->HBM DMA per flattened input into its output slab."""
    lengths = tuple(int(l) for l in lengths)
    offsets = []
    acc = 0
    for l in lengths:
        offsets.append(acc)
        acc += l
    offsets = tuple(offsets)
    n_in = len(lengths)

    def kernel(*refs):
        in_refs = refs[:n_in]          # raw HBM refs (memory_space=pl.ANY)
        out_ref = refs[n_in]           # raw HBM ref for the concatenated result
        sem = refs[n_in + 1]           # one DMA semaphore per input

        copies = []
        for i, (src, off, l) in enumerate(zip(in_refs, offsets, lengths)):
            # Strided 2-D HBM->HBM copy: src rows of length l_i, dst rows are
            # the static slab [off, off+l) of rows of length l_total.
            cp = pltpu.make_async_copy(src, out_ref.at[:, pl.ds(off, l)], sem.at[i])
            cp.start()
            copies.append(cp)
        # All slab copies are independent; overlap them, then wait on all.
        for cp in copies:
            cp.wait()

    return kernel


def correspondence_map_base(x1, x2=None, x3=None):
    """Pallas equivalent of CorrespondenceMapBase.forward (NCHW concat on C)."""
    # Mirror the PyTorch branching exactly.
    if x2 is not None and x3 is None:
        xs = (x1, x2)
    elif x2 is None and x3 is not None:
        xs = (x1, x3)
    elif x2 is not None and x3 is not None:
        xs = (x1, x2, x3)
    else:
        # Single input: forward returns x1 unchanged (no copy in PyTorch either).
        return x1

    N, _, H, W = (int(d) for d in x1.shape)
    dtype = x1.dtype
    for x in xs:
        assert x.ndim == 4 and int(x.shape[0]) == N \
            and int(x.shape[2]) == H and int(x.shape[3]) == W, \
            "all inputs must share N, H, W (torch.cat dim=1 requirement)"
        assert x.dtype == dtype, "all inputs must share dtype"

    channels = [int(x.shape[1]) for x in xs]
    lengths = [c * H * W for c in channels]
    l_total = int(sum(lengths))
    c_total = int(sum(channels))

    # Metadata-only flattening: (N, C_i, H, W) -> (N, C_i*H*W).  Contiguous,
    # so the channel concat becomes a per-row slab concat.
    flats = [x.reshape(int(x.shape[0]), -1) for x in xs]

    kernel = _make_dma_concat_kernel(lengths)

    out_flat = pl.pallas_call(
        kernel,
        out_shape=jax.ShapeDtypeStruct((N, l_total), dtype),
        # Keep everything in place (HBM); the kernel moves bytes with DMAs only.
        in_specs=[pl.BlockSpec(memory_space=pl.ANY) for _ in flats],
        out_specs=pl.BlockSpec(memory_space=pl.ANY),
        scratch_shapes=[pltpu.SemaphoreType.DMA((len(flats),))],
    )(*flats)

    # Metadata-only reshape back to NCHW.
    return out_flat.reshape(N, c_total, H, W)


if __name__ == "__main__":
    # CorrespondenceMapBase.__init__ has no parameters (bn flag unused), so
    # there is nothing to initialize beyond the inputs themselves.
    key = jax.random.PRNGKey(0)
    k1, k2, k3 = jax.random.split(key, 3)

    N, C, H, W = 2, 4, 16, 16
    x1 = jax.random.normal(k1, (N, C, H, W), dtype=jnp.float32)
    x2 = jax.random.normal(k2, (N, C, H, W), dtype=jnp.float32)
    x3 = jax.random.normal(k3, (N, C, H, W), dtype=jnp.float32)

    # Case: x2 and x3 both provided -> cat((x1, x2, x3), dim=1)
    out = jax.block_until_ready(correspondence_map_base(x1, x2, x3))
    ref = jnp.concatenate((x1, x2, x3), axis=1)
    assert out.shape == (N, 3 * C, H, W)
    np.testing.assert_allclose(np.asarray(out), np.asarray(ref), rtol=0, atol=0)

    # Case: only x2 provided -> cat((x1, x2), dim=1)
    out12 = jax.block_until_ready(correspondence_map_base(x1, x2))
    np.testing.assert_allclose(
        np.asarray(out12), np.asarray(jnp.concatenate((x1, x2), axis=1)),
        rtol=0, atol=0)

    # Case: only x3 provided -> cat((x1, x3), dim=1)
    out13 = jax.block_until_ready(correspondence_map_base(x1, x3=x3))
    np.testing.assert_allclose(
        np.asarray(out13), np.asarray(jnp.concatenate((x1, x3), axis=1)),
        rtol=0, atol=0)

    # Case: only x1 -> identity (returned as-is, like PyTorch)
    out1 = jax.block_until_ready(correspondence_map_base(x1))
    np.testing.assert_allclose(np.asarray(out1), np.asarray(x1), rtol=0, atol=0)

    # Mixed channel counts (different C_i) to exercise non-uniform slabs.
    x2b = jax.random.normal(k2, (N, 2 * C, H, W), dtype=jnp.float32)
    outmx = jax.block_until_ready(correspondence_map_base(x1, x2b, x3))
    np.testing.assert_allclose(
        np.asarray(outmx), np.asarray(jnp.concatenate((x1, x2b, x3), axis=1)),
        rtol=0, atol=0)

    # Non-128-multiple spatial size (7x7 -> slab offsets not lane aligned):
    # the DMA path is byte-granular, so this stays fast and exact.
    k4, k5 = jax.random.split(k3)
    y1 = jax.random.normal(k4, (N, C, 7, 7), dtype=jnp.float32)
    y2 = jax.random.normal(k5, (N, C + 1, 7, 7), dtype=jnp.float32)
    outy = jax.block_until_ready(correspondence_map_base(y1, y2))
    np.testing.assert_allclose(
        np.asarray(outy), np.asarray(jnp.concatenate((y1, y2), axis=1)),
        rtol=0, atol=0)

    print("KERNEL_OK")
</pallas_src>

<mosaic_0001>
module attributes {stable_mosaic.version = 11 : i64} {
  func.func @kernel(%arg0: memref<2x1024xf32, #tpu.memory_space<any>>, %arg1: memref<2x1024xf32, #tpu.memory_space<any>>, %arg2: memref<2x1024xf32, #tpu.memory_space<any>>, %arg3: memref<2x3072xf32, #tpu.memory_space<any>>, %arg4: memref<3x!tpu.dma_semaphore, #tpu.memory_space<semaphore_mem>>) attributes {dimension_semantics = [], scalar_prefetch = 0 : i64, scratch_operands = 1 : i64, tpu.core_type = #tpu.core_type<tc>} {
    %c0_i32 = arith.constant 0 : i32
    %c0_i32_0 = arith.constant 0 : i32
    %c0_i32_1 = arith.constant 0 : i32
    %0 = tpu.memref_slice %arg3[%c0_i32_0, %c0_i32_1] : memref<2x3072xf32, #tpu.memory_space<any>> -> memref<2x1024xf32, #tpu.memory_space<any>>
    %1 = tpu.memref_slice %arg4[%c0_i32] : memref<3x!tpu.dma_semaphore, #tpu.memory_space<semaphore_mem>> -> memref<1x!tpu.dma_semaphore, #tpu.memory_space<semaphore_mem>>
    %2 = tpu.memref_squeeze %1 : memref<1x!tpu.dma_semaphore, #tpu.memory_space<semaphore_mem>> -> memref<!tpu.dma_semaphore, #tpu.memory_space<semaphore_mem>>
    tpu.enqueue_dma source(%arg0 : memref<2x1024xf32, #tpu.memory_space<any>>) target(%0 : memref<2x1024xf32, #tpu.memory_space<any>>) target_semaphore(%2 : memref<!tpu.dma_semaphore, #tpu.memory_space<semaphore_mem>>)
    %c1_i32 = arith.constant 1 : i32
    %c0_i32_2 = arith.constant 0 : i32
    %c1024_i32 = arith.constant 1024 : i32
    %3 = tpu.memref_slice %arg3[%c0_i32_2, %c1024_i32] : memref<2x3072xf32, #tpu.memory_space<any>> -> memref<2x1024xf32, #tpu.memory_space<any>>
    %4 = tpu.memref_slice %arg4[%c1_i32] : memref<3x!tpu.dma_semaphore, #tpu.memory_space<semaphore_mem>> -> memref<1x!tpu.dma_semaphore, #tpu.memory_space<semaphore_mem>>
    %5 = tpu.memref_squeeze %4 : memref<1x!tpu.dma_semaphore, #tpu.memory_space<semaphore_mem>> -> memref<!tpu.dma_semaphore, #tpu.memory_space<semaphore_mem>>
    tpu.enqueue_dma source(%arg1 : memref<2x1024xf32, #tpu.memory_space<any>>) target(%3 : memref<2x1024xf32, #tpu.memory_space<any>>) target_semaphore(%5 : memref<!tpu.dma_semaphore, #tpu.memory_space<semaphore_mem>>)
    %c2_i32 = arith.constant 2 : i32
    %c0_i32_3 = arith.constant 0 : i32
    %c2048_i32 = arith.constant 2048 : i32
    %6 = tpu.memref_slice %arg3[%c0_i32_3, %c2048_i32] : memref<2x3072xf32, #tpu.memory_space<any>> -> memref<2x1024xf32, #tpu.memory_space<any>>
    %7 = tpu.memref_slice %arg4[%c2_i32] : memref<3x!tpu.dma_semaphore, #tpu.memory_space<semaphore_mem>> -> memref<1x!tpu.dma_semaphore, #tpu.memory_space<semaphore_mem>>
    %8 = tpu.memref_squeeze %7 : memref<1x!tpu.dma_semaphore, #tpu.memory_space<semaphore_mem>> -> memref<!tpu.dma_semaphore, #tpu.memory_space<semaphore_mem>>
    tpu.enqueue_dma source(%arg2 : memref<2x1024xf32, #tpu.memory_space<any>>) target(%6 : memref<2x1024xf32, #tpu.memory_space<any>>) target_semaphore(%8 : memref<!tpu.dma_semaphore, #tpu.memory_space<semaphore_mem>>)
    %c0_i32_4 = arith.constant 0 : i32
    %c0_i32_5 = arith.constant 0 : i32
    %c0_i32_6 = arith.constant 0 : i32
    %9 = tpu.memref_slice %arg3[%c0_i32_5, %c0_i32_6] : memref<2x3072xf32, #tpu.memory_space<any>> -> memref<2x1024xf32, #tpu.memory_space<any>>
    %10 = tpu.memref_slice %arg4[%c0_i32_4] : memref<3x!tpu.dma_semaphore, #tpu.memory_space<semaphore_mem>> -> memref<1x!tpu.dma_semaphore, #tpu.memory_space<semaphore_mem>>
    %11 = tpu.memref_squeeze %10 : memref<1x!tpu.dma_semaphore, #tpu.memory_space<semaphore_mem>> -> memref<!tpu.dma_semaphore, #tpu.memory_space<semaphore_mem>>
    tpu.wait_dma2 semaphore(%11 : memref<!tpu.dma_semaphore, #tpu.memory_space<semaphore_mem>>) src(%arg0 : memref<2x1024xf32, #tpu.memory_space<any>>) dst(%9 : memref<2x1024xf32, #tpu.memory_space<any>>)
    %c1_i32_7 = arith.constant 1 : i32
    %c0_i32_8 = arith.constant 0 : i32
    %c1024_i32_9 = arith.constant 1024 : i32
    %12 = tpu.memref_slice %arg3[%c0_i32_8, %c1024_i32_9] : memref<2x3072xf32, #tpu.memory_space<any>> -> memref<2x1024xf32, #tpu.memory_space<any>>
    %13 = tpu.memref_slice %arg4[%c1_i32_7] : memref<3x!tpu.dma_semaphore, #tpu.memory_space<semaphore_mem>> -> memref<1x!tpu.dma_semaphore, #tpu.memory_space<semaphore_mem>>
    %14 = tpu.memref_squeeze %13 : memref<1x!tpu.dma_semaphore, #tpu.memory_space<semaphore_mem>> -> memref<!tpu.dma_semaphore, #tpu.memory_space<semaphore_mem>>
    tpu.wait_dma2 semaphore(%14 : memref<!tpu.dma_semaphore, #tpu.memory_space<semaphore_mem>>) src(%arg1 : memref<2x1024xf32, #tpu.memory_space<any>>) dst(%12 : memref<2x1024xf32, #tpu.memory_space<any>>)
    %c2_i32_10 = arith.constant 2 : i32
    %c0_i32_11 = arith.constant 0 : i32
    %c2048_i32_12 = arith.constant 2048 : i32
    %15 = tpu.memref_slice %arg3[%c0_i32_11, %c2048_i32_12] : memref<2x3072xf32, #tpu.memory_space<any>> -> memref<2x1024xf32, #tpu.memory_space<any>>
    %16 = tpu.memref_slice %arg4[%c2_i32_10] : memref<3x!tpu.dma_semaphore, #tpu.memory_space<semaphore_mem>> -> memref<1x!tpu.dma_semaphore, #tpu.memory_space<semaphore_mem>>
    %17 = tpu.memref_squeeze %16 : memref<1x!tpu.dma_semaphore, #tpu.memory_space<semaphore_mem>> -> memref<!tpu.dma_semaphore, #tpu.memory_space<semaphore_mem>>
    tpu.wait_dma2 semaphore(%17 : memref<!tpu.dma_semaphore, #tpu.memory_space<semaphore_mem>>) src(%arg2 : memref<2x1024xf32, #tpu.memory_space<any>>) dst(%15 : memref<2x1024xf32, #tpu.memory_space<any>>)
    return
  }
}

</mosaic_0001>

<llo_original>
// kernel: tpu_custom_call.1
$region0: #{tpu_custom_call.1}
  #allocation0 [shape = 'u32[]', space=smem, size = 0x4, offset = 0x4, fixed_abs, tag = 'smem constant byte address 0x4 - core index']
  #allocation1 [shape = 'u32[72,128]{1,0:T(1,128)}', space=vmem, size = 0x9000, scoped, tag = 'internal scratch']
  #allocation2 [shape = 's32[3]{0}', space=sflag, size = 0xc, scoped, tag = 'scratch operand']
  #allocation3 [shape = 's32[]', space=sflag, size = 0x4, offset = 0, fixed_abs, tag = 'sflag constant byte address 0x0 - dummy sync flag']
  #allocation4 [shape = 'u32[0]{0}', space=smem, size = 0, offset = 0, fixed_abs, tag = 'smem constant byte address 0x0 - null']
  #allocation5 [shape = 's32[]', space=sflag, size = 0x4, offset = 0, fixed_abs, tag = 'sflag constant byte address 0x0 - dummy sync flag']
  #allocation6 [shape = 'u32[0]{0}', space=smem, size = 0, offset = 0, fixed_abs, tag = 'smem constant byte address 0x0 - null']
  #allocation7 [shape = 's32[]', space=sflag, size = 0x4, offset = 0, fixed_abs, tag = 'sflag constant byte address 0x0 - dummy sync flag']
  #allocation8 [shape = 'u32[0]{0}', space=smem, size = 0, offset = 0, fixed_abs, tag = 'smem constant byte address 0x0 - null']
  %s0 = inlined_call_operand.hbm [shape: f32[2,1024], index: 0, kind: input, shape index: {}]
  %s1 = inlined_call_operand.hbm [shape: f32[2,1024], index: 1, kind: input, shape index: {}]
  %s2 = inlined_call_operand.hbm [shape: f32[2,1024], index: 2, kind: input, shape index: {}]
  %s3 = inlined_call_operand.hbm [shape: f32[2,3072], index: 3, kind: output, shape index: {}]
  %s4 = sld [smem:[#allocation0]]
  $region2: #{tpu_custom_call.1} parent=0
    _
  %s6 = ssub.s32 1, %s4
  %s7 = scalar_select 0, %s6, %s4
  %s9 = sshll.u32 1, 14
  %s10 = sxor.u32 4294967295, %s9
  %s12 = sshll.u32 %s0, 4
  %s13 = int_to_ptr.hbm [resolvable:$true] %s12
  %s14 = sshll.u32 %s3, 4
  %s15 = int_to_ptr.hbm [resolvable:$true] %s14
  %18 = dma.general %s13, 256, %s15, [#allocation2], [#allocation3], [#allocation4], 0, 0
  %s19 = scalar_lea.hbm %s3, 16
  %s20 = scalar_lea.sflag [#allocation2], 1
  %s22 = sshll.u32 1, 14
  %s23 = sxor.u32 4294967295, %s22
  %s25 = sshll.u32 %s1, 4
  %s26 = int_to_ptr.hbm [resolvable:$true] %s25
  %s27 = sshll.u32 %s19, 4
  %s28 = int_to_ptr.hbm [resolvable:$true] %s27
  %31 = dma.general %s26, 256, %s28, %s20, [#allocation5], [#allocation6], 0, 0
  %s32 = scalar_lea.hbm %s3, 32
  %s33 = scalar_lea.sflag [#allocation2], 2
  %s35 = sshll.u32 1, 14
  %s36 = sxor.u32 4294967295, %s35
  %s38 = sshll.u32 %s2, 4
  %s39 = int_to_ptr.hbm [resolvable:$true] %s38
  %s40 = sshll.u32 %s32, 4
  %s41 = int_to_ptr.hbm [resolvable:$true] %s40
  %44 = dma.general %s39, 256, %s41, %s33, [#allocation7], [#allocation8], 0, 0
  %s45 = smul.u32 2, 1
  %s46 = smul.u32 %s45, 8
  %s47 = sshll.u32 %s46, 4
  %48 = dma.done [#allocation2], %s47
  %s49 = sshll.u32 %s46, 4
  %50 = dma.done %s20, %s49
  %s51 = sshll.u32 %s46, 4
  %52 = dma.done %s33, %s51
  %53 = vsyncmov [#allocation2]
  %s54 = vpop.sfrf %53
  %p55 = scmp.eq.s32.totalorder %s54, 0
  %p56 = pneg %p55
  %58 = shalt.err (%p56)
  %s59 = scalar_lea.sflag [#allocation2], 1
  %60 = vsyncmov %s59
  %s61 = vpop.sfrf %60
  %p62 = scmp.eq.s32.totalorder %s61, 0
  %p63 = pneg %p62
  %65 = shalt.err (%p63)
  %s66 = scalar_lea.sflag [#allocation2], 2
  %67 = vsyncmov %s66
  %s68 = vpop.sfrf %67
  %p69 = scmp.eq.s32.totalorder %s68, 0
  %p70 = pneg %p69
  %72 = shalt.err (%p70)

</llo_original>
